<compile_context>
chip_gen: v6e
topology: v6e:2x2x1
jax: 0.10.0
libtpu: 0.0.40
codegen_flags: <defaults>
</compile_context>

<pallas_src>
import jax
import jax.numpy as jnp
from jax.experimental import pallas as pl
from jax.experimental.pallas import tpu as pltpu

_LANE_CANDIDATES = (512, 256, 128)      # capped lane widths (multiples of 128)
_TILE_R = 512                           # row tile for the pipelined path
_SMALL_BLOCK_BYTES = 4 * 1024 * 1024    # whole-array single block if under this
# Per-element VMEM bytes of one grid step: 5 f32 inputs + 4 f32 outs + 1 i8 out.
_BYTES_PER_ELEM = 5 * 4 + 4 * 4 + 1


def _choose_flat_shape(n_padded):
    """Pick (rows, lanes) with lanes <= 512, lanes % 128 == 0, rows % 8 == 0."""
    for lanes in _LANE_CANDIDATES:
        if n_padded % lanes == 0 and (n_padded // lanes) % 8 == 0:
            return n_padded // lanes, lanes
    # n_padded is a multiple of 8*128 by construction, so lanes=128 always hits.
    return n_padded // 128, 128


def _elementwise_kernel(x1_ref, x2_ref, x3_ref, x4_ref, x5_ref,
                        add_ref, sub_ref, mul_ref, div_ref, cmp_ref):
    x1 = x1_ref[...]
    x2 = x2_ref[...]
    x3 = x3_ref[...]
    x4 = x4_ref[...]
    x5 = x5_ref[...]

    add_ref[...] = x1 + x2                               # torch.add(x1, x2)
    sub_ref[...] = x3 - x4                               # torch.sub(x3, x4)
    mul_ref[...] = x2 * x5                               # torch.mul(x2, x5)
    div_ref[...] = x4 / (x5 + jnp.float32(1e-08))        # torch.div(x4, x5+1e-8)
    cmp_ref[...] = (x1 > x3).astype(jnp.int8)            # x1 > x3, as 0/1 int8


@jax.jit
def pt_module_forward(x1, x2, x3, x4, x5):
    """Replicates PtModule.forward. All inputs share shape and are float32."""
    orig_shape = x1.shape
    n = x1.size
    # Pad flat length to a multiple of 8*128 so a (rows%8==0, lanes%128==0)
    # 2D slab always exists; padded tail is finite for every op and sliced off.
    n_padded = ((n + 1023) // 1024) * 1024
    rows, lanes = _choose_flat_shape(n_padded)
    flat_shape = (rows, lanes)

    def to_slab(a):
        a = a.reshape(-1)
        if n_padded != n:
            a = jnp.pad(a, (0, n_padded - n))
        return a.reshape(flat_shape)

    flat_inputs = [to_slab(a) for a in (x1, x2, x3, x4, x5)]

    out_shapes = (
        jax.ShapeDtypeStruct(flat_shape, jnp.float32),   # addition
        jax.ShapeDtypeStruct(flat_shape, jnp.float32),   # subtraction
        jax.ShapeDtypeStruct(flat_shape, jnp.float32),   # multiplication
        jax.ShapeDtypeStruct(flat_shape, jnp.float32),   # division
        jax.ShapeDtypeStruct(flat_shape, jnp.int8),      # comparison (0/1)
    )

    block_bytes = rows * lanes * _BYTES_PER_ELEM
    if block_bytes <= _SMALL_BLOCK_BYTES:
        # Overhead-bound regime: one whole-array block per operand, no grid.
        in_spec = pl.BlockSpec(flat_shape, lambda: (0, 0))
        out_spec = pl.BlockSpec(flat_shape, lambda: (0, 0))
        outs = pl.pallas_call(
            _elementwise_kernel,
            out_shape=out_shapes,
            in_specs=[in_spec] * 5,
            out_specs=[out_spec] * 5,
        )(*flat_inputs)
    else:
        # Large-shape path: 1-D row grid (cdiv handles ragged last tile),
        # pipelined input/output DMAs, megacore-parallel on v7x.
        # Per-step VMEM = 37 B/elem * TILE_R * lanes * 2 buffers
        #               = ~19.4 MiB at TILE_R=512, lanes=512.
        grid = (pl.cdiv(rows, _TILE_R),)
        in_spec = pl.BlockSpec((_TILE_R, lanes), lambda i: (i, 0))
        out_spec = pl.BlockSpec((_TILE_R, lanes), lambda i: (i, 0))
        outs = pl.pallas_call(
            _elementwise_kernel,
            out_shape=out_shapes,
            grid=grid,
            in_specs=[in_spec] * 5,
            out_specs=[out_spec] * 5,
            compiler_params=pltpu.CompilerParams(
                dimension_semantics=("parallel",),
                vmem_limit_bytes=48 * 1024 * 1024),
        )(*flat_inputs)

    def from_slab(a):
        a = a.reshape(-1)
        if n_padded != n:
            a = a[:n]
        return a.reshape(orig_shape)

    addition = from_slab(outs[0])
    subtraction = from_slab(outs[1])
    multiplication = from_slab(outs[2])
    division = from_slab(outs[3])
    comparison = from_slab(outs[4]).astype(jnp.bool_)    # fused by jit
    return addition, subtraction, multiplication, division, comparison


def _reference(x1, x2, x3, x4, x5):
    return (
        x1 + x2,
        x3 - x4,
        x2 * x5,
        x4 / (x5 + 1e-08),
        x1 > x3,
    )


if __name__ == "__main__":
    key = jax.random.PRNGKey(0)
    k1, k2, k3, k4, k5 = jax.random.split(key, 5)
    shape = (2, 4, 16, 16)  # NCHW
    x1 = jax.random.normal(k1, shape, dtype=jnp.float32)
    x2 = jax.random.normal(k2, shape, dtype=jnp.float32)
    x3 = jax.random.normal(k3, shape, dtype=jnp.float32)
    x4 = jax.random.normal(k4, shape, dtype=jnp.float32)
    x5 = jax.random.normal(k5, shape, dtype=jnp.float32)

    outs = pt_module_forward(x1, x2, x3, x4, x5)
    outs = jax.block_until_ready(outs)

    refs = _reference(x1, x2, x3, x4, x5)
    for got, want in zip(outs[:4], refs[:4]):
        assert got.shape == want.shape and got.dtype == want.dtype
        assert jnp.allclose(got, want, rtol=1e-6, atol=1e-6)
    assert outs[4].dtype == jnp.bool_
    assert outs[4].shape == refs[4].shape
    assert bool(jnp.array_equal(outs[4], refs[4]))

    print("KERNEL_OK")
</pallas_src>

<mosaic_0001>
module attributes {stable_mosaic.version = 11 : i64} {
  func.func @_elementwise_kernel(%arg0: memref<8x256xf32, #tpu.memory_space<vmem>>, %arg1: memref<8x256xf32, #tpu.memory_space<vmem>>, %arg2: memref<8x256xf32, #tpu.memory_space<vmem>>, %arg3: memref<8x256xf32, #tpu.memory_space<vmem>>, %arg4: memref<8x256xf32, #tpu.memory_space<vmem>>, %arg5: memref<8x256xf32, #tpu.memory_space<vmem>>, %arg6: memref<8x256xf32, #tpu.memory_space<vmem>>, %arg7: memref<8x256xf32, #tpu.memory_space<vmem>>, %arg8: memref<8x256xf32, #tpu.memory_space<vmem>>, %arg9: memref<8x256xi8, #tpu.memory_space<vmem>>) attributes {dimension_semantics = [], scalar_prefetch = 0 : i64, scratch_operands = 0 : i64, tpu.core_type = #tpu.core_type<tc>} {
    %c0 = arith.constant 0 : index
    %c0_0 = arith.constant 0 : index
    %0 = vector.load %arg0[%c0, %c0_0] : memref<8x256xf32, #tpu.memory_space<vmem>>, vector<8x256xf32>
    %c0_1 = arith.constant 0 : index
    %c0_2 = arith.constant 0 : index
    %1 = vector.load %arg1[%c0_1, %c0_2] : memref<8x256xf32, #tpu.memory_space<vmem>>, vector<8x256xf32>
    %c0_3 = arith.constant 0 : index
    %c0_4 = arith.constant 0 : index
    %2 = vector.load %arg2[%c0_3, %c0_4] : memref<8x256xf32, #tpu.memory_space<vmem>>, vector<8x256xf32>
    %c0_5 = arith.constant 0 : index
    %c0_6 = arith.constant 0 : index
    %3 = vector.load %arg3[%c0_5, %c0_6] : memref<8x256xf32, #tpu.memory_space<vmem>>, vector<8x256xf32>
    %c0_7 = arith.constant 0 : index
    %c0_8 = arith.constant 0 : index
    %4 = vector.load %arg4[%c0_7, %c0_8] : memref<8x256xf32, #tpu.memory_space<vmem>>, vector<8x256xf32>
    %5 = arith.addf %0, %1 : vector<8x256xf32>
    %c0_9 = arith.constant 0 : index
    %c0_10 = arith.constant 0 : index
    %6 = vector.load %arg5[%c0_9, %c0_10] : memref<8x256xf32, #tpu.memory_space<vmem>>, vector<8x256xf32>
    tpu.vector_store %arg5[%c0_9, %c0_10], %5 {strides = array<i32>} : memref<8x256xf32, #tpu.memory_space<vmem>>, vector<8x256xf32>,
    %7 = arith.subf %2, %3 : vector<8x256xf32>
    %c0_11 = arith.constant 0 : index
    %c0_12 = arith.constant 0 : index
    %8 = vector.load %arg6[%c0_11, %c0_12] : memref<8x256xf32, #tpu.memory_space<vmem>>, vector<8x256xf32>
    tpu.vector_store %arg6[%c0_11, %c0_12], %7 {strides = array<i32>} : memref<8x256xf32, #tpu.memory_space<vmem>>, vector<8x256xf32>,
    %9 = arith.mulf %1, %4 : vector<8x256xf32>
    %c0_13 = arith.constant 0 : index
    %c0_14 = arith.constant 0 : index
    %10 = vector.load %arg7[%c0_13, %c0_14] : memref<8x256xf32, #tpu.memory_space<vmem>>, vector<8x256xf32>
    tpu.vector_store %arg7[%c0_13, %c0_14], %9 {strides = array<i32>} : memref<8x256xf32, #tpu.memory_space<vmem>>, vector<8x256xf32>,
    %cst = arith.constant 9.99999993E-9 : f32
    %11 = vector.broadcast %cst : f32 to vector<8x256xf32>
    %12 = arith.addf %4, %11 : vector<8x256xf32>
    %13 = arith.divf %3, %12 : vector<8x256xf32>
    %c0_15 = arith.constant 0 : index
    %c0_16 = arith.constant 0 : index
    %14 = vector.load %arg8[%c0_15, %c0_16] : memref<8x256xf32, #tpu.memory_space<vmem>>, vector<8x256xf32>
    tpu.vector_store %arg8[%c0_15, %c0_16], %13 {strides = array<i32>} : memref<8x256xf32, #tpu.memory_space<vmem>>, vector<8x256xf32>,
    %15 = arith.cmpf ogt, %0, %2 : vector<8x256xf32>
    %16 = arith.extui %15 : vector<8x256xi1> to vector<8x256xi8>
    %c0_17 = arith.constant 0 : index
    %c0_18 = arith.constant 0 : index
    %17 = vector.load %arg9[%c0_17, %c0_18] : memref<8x256xi8, #tpu.memory_space<vmem>>, vector<8x256xi8>
    tpu.vector_store %arg9[%c0_17, %c0_18], %16 {strides = array<i32>} : memref<8x256xi8, #tpu.memory_space<vmem>>, vector<8x256xi8>,
    return
  }
}

</mosaic_0001>

<llo_original>
// kernel: pt_module_forward.1
$region0: #{pt_module_forward.1}
  #allocation0 [shape = 'u32[]', space=smem, size = 0x4, offset = 0x4, fixed_abs, tag = 'smem constant byte address 0x4 - core index']
  #allocation1 [shape = 'u32[144,128]{1,0:T(1,128)}', space=vmem, size = 0x12000, scoped, tag = 'internal scratch']
  %s0 = inlined_call_operand.vmem [shape: f32[8,256], index: 0, kind: input, shape index: {}]
  %s1 = inlined_call_operand.vmem [shape: f32[8,256], index: 1, kind: input, shape index: {}]
  %s2 = inlined_call_operand.vmem [shape: f32[8,256], index: 2, kind: input, shape index: {}]
  %s3 = inlined_call_operand.vmem [shape: f32[8,256], index: 3, kind: input, shape index: {}]
  %s4 = inlined_call_operand.vmem [shape: f32[8,256], index: 4, kind: input, shape index: {}]
  %s5 = inlined_call_operand.vmem [shape: f32[8,256], index: 5, kind: output, shape index: {0}]
  %s6 = inlined_call_operand.vmem [shape: f32[8,256], index: 6, kind: output, shape index: {1}]
  %s7 = inlined_call_operand.vmem [shape: f32[8,256], index: 7, kind: output, shape index: {2}]
  %s8 = inlined_call_operand.vmem [shape: f32[8,256], index: 8, kind: output, shape index: {3}]
  %s9 = inlined_call_operand.vmem [shape: s8[8,256], index: 9, kind: output, shape index: {4}]
  %10 = xla_tuple %s5, %s6, %s7, %s8, %s9
  %s11 = sld [smem:[#allocation0]]
  $region62: #{pt_module_forward.1} parent=0
    _
  %s13 = ssub.s32 1, %s11
  %s14 = scalar_select 0, %s13, %s11
  // Predicated region
  $region2: #{pt_module_forward.1} parent=0 // pred_check
    _
  $region3: #{pt_module_forward.1} parent=0 // pred_check_branch
    %16 = sbr.rel (0) target = $region5
  $region4: #{pt_module_forward.1} parent=0 // pred_region
    _
  $region5: #{pt_module_forward.1} parent=0 // pred_fallthru
    _
  // Predicated region
  $region6: #{pt_module_forward.1} parent=0 // pred_check
    _
  $region7: #{pt_module_forward.1} parent=0 // pred_check_branch
    %18 = sbr.rel (0) target = $region9
  $region8: #{pt_module_forward.1} parent=0 // pred_region
    _
  $region9: #{pt_module_forward.1} parent=0 // pred_fallthru
    _
  // Predicated region
  $region10: #{pt_module_forward.1} parent=0 // pred_check
    _
  $region11: #{pt_module_forward.1} parent=0 // pred_check_branch
    %20 = sbr.rel (0) target = $region13
  $region12: #{pt_module_forward.1} parent=0 // pred_region
    _
  $region13: #{pt_module_forward.1} parent=0 // pred_fallthru
    _
  // Predicated region
  $region14: #{pt_module_forward.1} parent=0 // pred_check
    _
  $region15: #{pt_module_forward.1} parent=0 // pred_check_branch
    %22 = sbr.rel (0) target = $region17
  $region16: #{pt_module_forward.1} parent=0 // pred_region
    _
  $region17: #{pt_module_forward.1} parent=0 // pred_fallthru
    _
  // Predicated region
  $region18: #{pt_module_forward.1} parent=0 // pred_check
    _
  $region19: #{pt_module_forward.1} parent=0 // pred_check_branch
    %24 = sbr.rel (0) target = $region21
  $region20: #{pt_module_forward.1} parent=0 // pred_region
    _
  $region21: #{pt_module_forward.1} parent=0 // pred_fallthru
    _
  %v27 = vld [vmem:[%s0] sm:$0xff]
  %v28 = vld [vmem:[%s0 + $0x8] sm:$0xff]
  %v29 = vld [vmem:[%s1] sm:$0xff]
  %v30 = vld [vmem:[%s1 + $0x8] sm:$0xff]
  %v31 = vld [vmem:[%s2] sm:$0xff]
  %v32 = vld [vmem:[%s2 + $0x8] sm:$0xff]
  %v33 = vld [vmem:[%s3] sm:$0xff]
  %v34 = vld [vmem:[%s3 + $0x8] sm:$0xff]
  %v35 = vld [vmem:[%s4] sm:$0xff]
  %v36 = vld [vmem:[%s4 + $0x8] sm:$0xff]
  %v37 = vadd.f32 %v27, %v29
  %v38 = vadd.f32 %v28, %v30
  %39 = vst [vmem:[%s5] sm:$0xff] %v37
  %40 = vst [vmem:[%s5 + $0x8] sm:$0xff] %v38
  %v41 = vsub.f32 %v31, %v33
  %v42 = vsub.f32 %v32, %v34
  %43 = vst [vmem:[%s6] sm:$0xff] %v41
  %44 = vst [vmem:[%s6 + $0x8] sm:$0xff] %v42
  %v45 = vmul.f32 %v29, %v35
  %v46 = vmul.f32 %v30, %v36
  %47 = vst [vmem:[%s7] sm:$0xff] %v45
  %48 = vst [vmem:[%s7 + $0x8] sm:$0xff] %v46
  %v49 = vadd.f32 %v35, 1e-08
  %v50 = vadd.f32 %v36, 1e-08
  %v51 = vrcp.pop %v49
  %v52 = vmul.f32 %v33, %v51
  %v53 = vrcp.pop %v50
  %v54 = vmul.f32 %v34, %v53
  %55 = vst [vmem:[%s8] sm:$0xff] %v52
  %56 = vst [vmem:[%s8 + $0x8] sm:$0xff] %v54
  %vm57 = vcmp.gt.f32.partialorder %v27, %v31
  %vm58 = vcmp.gt.f32.partialorder %v28, %v32
  %vm59 = vmpackc.low %vm57, %vm57
  %vm60 = vmpackc.even %vm59, %vm59
  %vm61 = vmpackc.low %vm58, %vm58
  %vm62 = vmpackc.even %vm61, %vm61
  %v63 = vsel %vm60, 16843009, 0
  %v64 = vsel %vm62, 16843009, 0
  %v65 = vunpack.c.0.s8 %v63
  %v66 = vunpack.c.0.s8 %v64
  %v67 = vpack.c.b16 %v66, %v65
  %v68 = vpack.c.b8 %v67, %v67
  %69 = vst [vmem:[%s9] sm:$0xf] %v68
  // Predicated region
  $region22: #{pt_module_forward.1} parent=0 // pred_check
    _
  $region23: #{pt_module_forward.1} parent=0 // pred_check_branch
    %71 = sbr.rel (0) target = $region25
  $region24: #{pt_module_forward.1} parent=0 // pred_region
    _
  $region25: #{pt_module_forward.1} parent=0 // pred_fallthru
    _
  // Predicated region
  $region26: #{pt_module_forward.1} parent=0 // pred_check
    _
  $region27: #{pt_module_forward.1} parent=0 // pred_check_branch
    %73 = sbr.rel (0) target = $region29
  $region28: #{pt_module_forward.1} parent=0 // pred_region
    _
  $region29: #{pt_module_forward.1} parent=0 // pred_fallthru
    _
  // Predicated region
  $region30: #{pt_module_forward.1} parent=0 // pred_check
    _
  $region31: #{pt_module_forward.1} parent=0 // pred_check_branch
    %75 = sbr.rel (0) target = $region33
  $region32: #{pt_module_forward.1} parent=0 // pred_region
    _
  $region33: #{pt_module_forward.1} parent=0 // pred_fallthru
    _
  // Predicated region
  $region34: #{pt_module_forward.1} parent=0 // pred_check
    _
  $region35: #{pt_module_forward.1} parent=0 // pred_check_branch
    %77 = sbr.rel (0) target = $region37
  $region36: #{pt_module_forward.1} parent=0 // pred_region
    _
  $region37: #{pt_module_forward.1} parent=0 // pred_fallthru
    _
  // Predicated region
  $region38: #{pt_module_forward.1} parent=0 // pred_check
    _
  $region39: #{pt_module_forward.1} parent=0 // pred_check_branch
    %79 = sbr.rel (0) target = $region41
  $region40: #{pt_module_forward.1} parent=0 // pred_region
    _
  $region41: #{pt_module_forward.1} parent=0 // pred_fallthru
    _
  // Predicated region
  $region42: #{pt_module_forward.1} parent=0 // pred_check
    _
  $region43: #{pt_module_forward.1} parent=0 // pred_check_branch
    %81 = sbr.rel (0) target = $region45
  $region44: #{pt_module_forward.1} parent=0 // pred_region
    _
  $region45: #{pt_module_forward.1} parent=0 // pred_fallthru
    _
  // Predicated region
  $region46: #{pt_module_forward.1} parent=0 // pred_check
    _
  $region47: #{pt_module_forward.1} parent=0 // pred_check_branch
    %83 = sbr.rel (0) target = $region49
  $region48: #{pt_module_forward.1} parent=0 // pred_region
    _
  $region49: #{pt_module_forward.1} parent=0 // pred_fallthru
    _
  // Predicated region
  $region50: #{pt_module_forward.1} parent=0 // pred_check
    _
  $region51: #{pt_module_forward.1} parent=0 // pred_check_branch
    %85 = sbr.rel (0) target = $region53
  $region52: #{pt_module_forward.1} parent=0 // pred_region
    _
  $region53: #{pt_module_forward.1} parent=0 // pred_fallthru
    _
  // Predicated region
  $region54: #{pt_module_forward.1} parent=0 // pred_check
    _
  $region55: #{pt_module_forward.1} parent=0 // pred_check_branch
    %87 = sbr.rel (0) target = $region57
  $region56: #{pt_module_forward.1} parent=0 // pred_region
    _
  $region57: #{pt_module_forward.1} parent=0 // pred_fallthru
    _
  // Predicated region
  $region58: #{pt_module_forward.1} parent=0 // pred_check
    _
  $region59: #{pt_module_forward.1} parent=0 // pred_check_branch
    %89 = sbr.rel (0) target = $region61
  $region60: #{pt_module_forward.1} parent=0 // pred_region
    _
  $region61: #{pt_module_forward.1} parent=0 // pred_fallthru
    _

</llo_original>
